<compile_context>
chip_gen: v7x
topology: tpu7x:2x2x1
jax: 0.10.0
libtpu: 0.0.40
codegen_flags: <defaults>
</compile_context>

<pallas_src>
import jax
import jax.numpy as jnp
from jax.experimental import pallas as pl
from jax.experimental.pallas import tpu as pltpu

_LANES = 128
_SUBLANES = 8
_MIN_BLOCK_ROWS = 16          # multiple of 16 -> valid block tile for f32 and bf16
_FAST_PATH_ELEMS = 1 << 19    # below ~0.5M total elements, plain jnp wins
_NATIVE_DTYPES = (jnp.float32, jnp.bfloat16)


def _cdiv(a, b):
    return -(-a // b)


def _chip_config():
    """Per-TPU-generation tiling knobs (safe fallback if detection fails)."""
    try:
        kind = jax.devices()[0].device_kind.lower()
    except Exception:  # pragma: no cover
        kind = ""
    if "v7" in kind or "7x" in kind:
        # 2 TensorCores, 64 MiB VMEM (32 MiB scoped): 4096-row (2 MiB f32)
        # blocks -> 2T inputs x 2 buffers = 16 MiB, well inside the budget.
        return dict(num_splits=2, target_rows=4096, vmem_limit=32 * 1024 * 1024)
    if "v6" in kind:
        # 1 TensorCore, 128 MiB physical VMEM: 8192-row (4 MiB) blocks.
        return dict(num_splits=1, target_rows=8192, vmem_limit=64 * 1024 * 1024)
    # v5e / v5p / unknown: already at the HBM roofline; keep modest tiles.
    return dict(num_splits=1, target_rows=4096, vmem_limit=32 * 1024 * 1024)


def _make_mtl_kernel(num_tasks, block_rows, chunks_per_split, n_valid):
    sub_chunks = block_rows // _SUBLANES
    blk_elems = block_rows * _LANES

    def kernel(*refs):
        pred_refs = refs[:num_tasks]         # each (block_rows, 128), native dtype
        label_ref = refs[num_tasks]          # (T, block_rows, 128), native dtype
        acc_ref = refs[num_tasks + 1]        # (T, 8, 128) f32 resident accumulator

        @pl.when(pl.program_id(1) == 0)
        def _zero():
            acc_ref[...] = jnp.zeros_like(acc_ref)

        # Global element ids of this block, computed from the UNclamped block
        # id, so that (a) the <=127 ragged-tail elements, (b) garbage rows of
        # a partial (overhanging) last block, and (c) fully out-of-range
        # duplicate blocks (whose DMA index_map is clamped in-bounds) all
        # contribute exactly 0.  A few VPU ops per block, hidden under DMA.
        blk = pl.program_id(0) * chunks_per_split + pl.program_id(1)
        base = blk * blk_elems
        row_i = jax.lax.broadcasted_iota(jnp.int32, (block_rows, _LANES), 0)
        lane_i = jax.lax.broadcasted_iota(jnp.int32, (block_rows, _LANES), 1)
        valid = (base + row_i * _LANES + lane_i) < n_valid

        for t in range(num_tasks):           # T is tiny -> unrolled at trace time
            p = pred_refs[t][...].astype(jnp.float32)   # in-kernel cast, free VPU
            l = label_ref[t].astype(jnp.float32)
            d = p - l
            sq = jnp.where(valid, d * d, 0.0)
            # Fold sublane-groups with pure VPU adds; keep the (8,128) shape.
            folded = jnp.sum(sq.reshape(sub_chunks, _SUBLANES, _LANES), axis=0)
            acc_ref[t, :, :] += folded

    return kernel


def multi_task_loss(output, label, tasks, loss_weights, *,
                    label_is_task_major=False, force_pallas=False):
    """output: dict task -> (N,1) or (N,) array.
    label: (N, T) with columns ordered as `tasks`; pass a (T, N) array with
    label_is_task_major=True to skip the one remaining relayout."""
    T = len(tasks)
    if label_is_task_major:
        assert label.shape[0] == T, "task-major label must be (T, N)"
        N = int(label.shape[1])
    else:
        assert label.shape[1] == T, "label must be (N, T) ordered as `tasks`"
        N = int(label.shape[0])

    preds = []
    for t in tasks:
        p = jnp.reshape(output[t], (-1,))
        assert p.shape[0] == N, f"output[{t}] length must equal label batch"
        preds.append(p)

    weights = jnp.array([loss_weights[t] for t in tasks], dtype=jnp.float32)
    rows = _cdiv(N, _LANES)

    # ---- small-problem fast path: slab building + kernel launch dominate. ----
    if (N * T < _FAST_PATH_ELEMS and not force_pallas) or rows < _MIN_BLOCK_ROWS:
        lab32 = label.astype(jnp.float32)
        mses = []
        for i in range(T):
            col = lab32[i] if label_is_task_major else lab32[:, i]
            d = preds[i].astype(jnp.float32) - col
            mses.append(jnp.mean(d * d))
        per_task = jnp.stack(mses)
        losses = {t: per_task[i] for i, t in enumerate(tasks)}
        losses["total"] = jnp.sum(weights * per_task)
        return losses

    # ---- Pallas streaming path ------------------------------------------------
    cfg = _chip_config()
    num_splits = cfg["num_splits"]
    pad_elems = rows * _LANES - N        # <= 127; zero iff N % 128 == 0

    def _native(x):
        return x if x.dtype in _NATIVE_DTYPES else x.astype(jnp.float32)

    def to_slab(flat):
        # Native-dtype streaming (the f32 cast happens inside the kernel).
        flat = _native(flat)
        if pad_elems:
            # Only for N % 128 != 0: pad by <=127 zeros so the lane-dense
            # reshape is possible.  For aligned N this is a free bitcast.
            flat = jnp.pad(flat, (0, pad_elems))
        return flat.reshape(rows, _LANES)

    pred_slabs = [to_slab(p) for p in preds]

    lab = _native(label)
    lab_tm = lab if label_is_task_major else lab.T   # ONE (N,T)->(T,N) relayout
    if pad_elems:
        lab_tm = jnp.pad(lab_tm, ((0, 0), (0, pad_elems)))
    label_slab = lab_tm.reshape(T, rows, _LANES)     # single 3-D input, no per-column slices

    # Block sizing: biggest block that fits the double-buffered VMEM budget.
    bytes_per_row = _LANES * (sum(s.dtype.itemsize for s in pred_slabs)
                              + T * label_slab.dtype.itemsize)
    block_rows = max(_MIN_BLOCK_ROWS,
                     min(cfg["target_rows"],
                         (rows // _MIN_BLOCK_ROWS) * _MIN_BLOCK_ROWS))
    budget = cfg["vmem_limit"] - (4 << 20)           # headroom for acc / internal scratch
    while block_rows > _MIN_BLOCK_ROWS and 2 * block_rows * bytes_per_row > budget:
        block_rows //= 2
    block_rows = max(_MIN_BLOCK_ROWS, (block_rows // _MIN_BLOCK_ROWS) * _MIN_BLOCK_ROWS)

    chunks_total = _cdiv(rows, block_rows)
    chunks_per_split = _cdiv(chunks_total, num_splits)
    max_blk = chunks_total - 1   # clamp DMAs in-bounds; dupes masked in-kernel

    def pred_map(c, k):
        return (jnp.minimum(c * chunks_per_split + k, max_blk), 0)

    def label_map(c, k):
        return (0, jnp.minimum(c * chunks_per_split + k, max_blk), 0)

    in_specs = ([pl.BlockSpec((block_rows, _LANES), pred_map)] * T
                + [pl.BlockSpec((T, block_rows, _LANES), label_map)])
    out_spec = pl.BlockSpec((None, T, _SUBLANES, _LANES), lambda c, k: (c, 0, 0, 0))

    out_bytes = num_splits * T * _SUBLANES * _LANES * 4
    bytes_accessed = (sum(int(s.size) * s.dtype.itemsize for s in pred_slabs)
                      + int(label_slab.size) * label_slab.dtype.itemsize
                      + out_bytes)
    cost = pl.CostEstimate(flops=3 * T * N, transcendentals=0,
                           bytes_accessed=int(bytes_accessed))

    acc = pl.pallas_call(
        _make_mtl_kernel(T, block_rows, chunks_per_split, N),
        out_shape=jax.ShapeDtypeStruct((num_splits, T, _SUBLANES, _LANES),
                                       jnp.float32),
        grid=(num_splits, chunks_per_split),
        in_specs=in_specs,
        out_specs=out_spec,
        compiler_params=pltpu.CompilerParams(
            dimension_semantics=("parallel", "arbitrary"),
            vmem_limit_bytes=cfg["vmem_limit"],
        ),
        cost_estimate=cost,
    )(*pred_slabs, label_slab)

    # Tiny epilogue on (splits, T, 8, 128) partial sums: per-task mean + total.
    per_task = acc.sum(axis=(0, 2, 3)) / jnp.float32(N)        # (T,)
    losses = {t: per_task[i] for i, t in enumerate(tasks)}
    losses["total"] = jnp.sum(weights * per_task)
    return losses


if __name__ == "__main__":
    tasks = ["taskA", "taskB"]
    loss_weights = {"taskA": 1.0, "taskB": 0.5}
    T = len(tasks)

    def reference(output, label):
        ref = {}
        for i, t in enumerate(tasks):
            d = (output[t].reshape(-1).astype(jnp.float32)
                 - label[:, i].astype(jnp.float32))
            ref[t] = jnp.mean(d * d)
        ref["total"] = sum(loss_weights[t] * ref[t] for t in tasks)
        return ref

    def check(got, want, tol, tag):
        for k in tasks + ["total"]:
            assert jnp.allclose(got[k], want[k], rtol=tol, atol=tol), (
                tag, k, got[k], want[k])

    key = jax.random.PRNGKey(0)

    # Case 1: module-typical tiny batch -> jnp fast path (no kernel launch).
    k1, k2, k3, key = jax.random.split(key, 4)
    out_s = {"taskA": jax.random.normal(k1, (8, 1), jnp.float32),
             "taskB": jax.random.normal(k2, (8, 1), jnp.float32)}
    lab_s = jax.random.normal(k3, (8, T), jnp.float32)
    got = jax.block_until_ready(multi_task_loss(out_s, lab_s, tasks, loss_weights))
    check(got, reference(out_s, lab_s), 1e-5, "fast_path")

    # Case 2: Pallas path, N a multiple of 128 -> zero wrapper-side pad copies.
    N = 4096
    k1, k2, k3, key = jax.random.split(key, 4)
    out_a = {"taskA": jax.random.normal(k1, (N, 1), jnp.float32),
             "taskB": jax.random.normal(k2, (N, 1), jnp.float32)}
    lab_a = jax.random.normal(k3, (N, T), jnp.float32)
    got = jax.block_until_ready(
        multi_task_loss(out_a, lab_a, tasks, loss_weights, force_pallas=True))
    check(got, reference(out_a, lab_a), 1e-5, "pallas_aligned_f32")

    # Case 3: Pallas path, ragged N (in-kernel tail masking exercised) with
    # bf16 predictions streamed in native dtype and cast to f32 in-kernel.
    N = 2000
    k1, k2, k3, key = jax.random.split(key, 4)
    out_b = {"taskA": jax.random.normal(k1, (N, 1), jnp.float32).astype(jnp.bfloat16),
             "taskB": jax.random.normal(k2, (N,), jnp.float32).astype(jnp.bfloat16)}
    lab_b = jax.random.normal(k3, (N, T), jnp.float32)
    got = jax.block_until_ready(
        multi_task_loss(out_b, lab_b, tasks, loss_weights, force_pallas=True))
    check(got, reference(out_b, lab_b), 1e-4, "pallas_ragged_bf16")

    # TODO(synk): the original module accepts arbitrary torch criterions per
    # task; this kernel instantiates MSELoss(reduction="mean") for every task.
    print("KERNEL_OK")
</pallas_src>

<mosaic_0001>
module attributes {stable_mosaic.version = 11 : i64} {
  func.func @kernel(%arg0: i32, %arg1: i32, %arg2: memref<32x128xf32, #tpu.memory_space<vmem>>, %arg3: memref<32x128xf32, #tpu.memory_space<vmem>>, %arg4: memref<2x32x128xf32, #tpu.memory_space<vmem>>, %arg5: memref<1x2x8x128xf32, #tpu.memory_space<vmem>>) attributes {dimension_semantics = [#tpu.dimension_semantics<parallel>, #tpu.dimension_semantics<arbitrary>], iteration_bounds = array<i64: 1, 1>, scalar_prefetch = 0 : i64, scratch_operands = 0 : i64, tpu.core_type = #tpu.core_type<tc>, window_params = [{transform_indices = @transform_0, window_bounds = array<i64: 32, 128>}, {transform_indices = @transform_1, window_bounds = array<i64: 32, 128>}, {transform_indices = @transform_2, window_bounds = array<i64: 2, 32, 128>}, {transform_indices = @transform_3, window_bounds = array<i64: 1, 2, 8, 128>}]} {
    %c0_i32 = arith.constant 0 : i32
    %0 = arith.cmpi eq, %arg1, %c0_i32 : i32
    %1 = arith.extui %0 : i1 to i32
    %c0_i32_0 = arith.constant 0 : i32
    %2 = arith.cmpi ne, %1, %c0_i32_0 : i32
    scf.if %2 {
      %cst_29 = arith.constant 0.000000e+00 : f32
      %45 = vector.broadcast %cst_29 : f32 to vector<2x8x128xf32>
      %c0_30 = arith.constant 0 : index
      %c0_31 = arith.constant 0 : index
      %c0_32 = arith.constant 0 : index
      %c0_33 = arith.constant 0 : index
      %46 = vector.load %arg5[%c0_30, %c0_31, %c0_32, %c0_33] : memref<1x2x8x128xf32, #tpu.memory_space<vmem>>, vector<1x2x8x128xf32>
      %47 = vector.shape_cast %46 : vector<1x2x8x128xf32> to vector<2x8x128xf32>
      %48 = vector.shape_cast %45 : vector<2x8x128xf32> to vector<1x2x8x128xf32>
      tpu.vector_store %arg5[%c0_30, %c0_31, %c0_32, %c0_33], %48 {strides = array<i32>} : memref<1x2x8x128xf32, #tpu.memory_space<vmem>>, vector<1x2x8x128xf32>,
    } else {
    }
    %c1_i32 = arith.constant 1 : i32
    %3 = arith.muli %arg0, %c1_i32 : i32
    %4 = arith.addi %3, %arg1 : i32
    %c4096_i32 = arith.constant 4096 : i32
    %5 = arith.muli %4, %c4096_i32 : i32
    %6 = tpu.iota {dimensions = array<i32: 0>} : vector<32x128xi32>
    %7 = tpu.iota {dimensions = array<i32: 1>} : vector<32x128xi32>
    %c128_i32 = arith.constant 128 : i32
    %8 = vector.broadcast %c128_i32 : i32 to vector<32x128xi32>
    %9 = arith.muli %6, %8 : vector<32x128xi32>
    %10 = vector.broadcast %5 : i32 to vector<32x128xi32>
    %11 = arith.addi %10, %9 : vector<32x128xi32>
    %12 = arith.addi %11, %7 : vector<32x128xi32>
    %c4096_i32_1 = arith.constant 4096 : i32
    %13 = vector.broadcast %c4096_i32_1 : i32 to vector<32x128xi32>
    %14 = arith.cmpi slt, %12, %13 : vector<32x128xi32>
    %c0 = arith.constant 0 : index
    %c0_2 = arith.constant 0 : index
    %15 = vector.load %arg2[%c0, %c0_2] : memref<32x128xf32, #tpu.memory_space<vmem>>, vector<32x128xf32>
    %c0_3 = arith.constant 0 : index
    %c0_4 = arith.constant 0 : index
    %c0_5 = arith.constant 0 : index
    %16 = vector.load %arg4[%c0_3, %c0_4, %c0_5] : memref<2x32x128xf32, #tpu.memory_space<vmem>>, vector<1x32x128xf32>
    %17 = vector.shape_cast %16 : vector<1x32x128xf32> to vector<32x128xf32>
    %18 = arith.subf %15, %17 : vector<32x128xf32>
    %19 = arith.mulf %18, %18 : vector<32x128xf32>
    %cst = arith.constant 0.000000e+00 : f32
    %20 = vector.broadcast %cst : f32 to vector<32x128xf32>
    %21 = arith.select %14, %19, %20 : vector<32x128xi1>, vector<32x128xf32>
    %22 = vector.shape_cast %21 : vector<32x128xf32> to vector<4x8x128xf32>
    %cst_6 = arith.constant dense<0.000000e+00> : vector<8x128xf32>
    %23 = vector.multi_reduction <add>, %22, %cst_6 [0] : vector<4x8x128xf32> to vector<8x128xf32>
    %c0_7 = arith.constant 0 : index
    %c0_8 = arith.constant 0 : index
    %c0_9 = arith.constant 0 : index
    %c0_10 = arith.constant 0 : index
    %24 = vector.load %arg5[%c0_7, %c0_8, %c0_9, %c0_10] : memref<1x2x8x128xf32, #tpu.memory_space<vmem>>, vector<1x1x8x128xf32>
    %25 = vector.shape_cast %24 : vector<1x1x8x128xf32> to vector<8x128xf32>
    %26 = arith.addf %25, %23 : vector<8x128xf32>
    %c0_11 = arith.constant 0 : index
    %c0_12 = arith.constant 0 : index
    %c0_13 = arith.constant 0 : index
    %c0_14 = arith.constant 0 : index
    %27 = vector.load %arg5[%c0_11, %c0_12, %c0_13, %c0_14] : memref<1x2x8x128xf32, #tpu.memory_space<vmem>>, vector<1x1x8x128xf32>
    %28 = vector.shape_cast %27 : vector<1x1x8x128xf32> to vector<8x128xf32>
    %29 = vector.shape_cast %26 : vector<8x128xf32> to vector<1x1x8x128xf32>
    tpu.vector_store %arg5[%c0_11, %c0_12, %c0_13, %c0_14], %29 {strides = array<i32>} : memref<1x2x8x128xf32, #tpu.memory_space<vmem>>, vector<1x1x8x128xf32>,
    %c0_15 = arith.constant 0 : index
    %c0_16 = arith.constant 0 : index
    %30 = vector.load %arg3[%c0_15, %c0_16] : memref<32x128xf32, #tpu.memory_space<vmem>>, vector<32x128xf32>
    %c1 = arith.constant 1 : index
    %c0_17 = arith.constant 0 : index
    %c0_18 = arith.constant 0 : index
    %31 = vector.load %arg4[%c1, %c0_17, %c0_18] : memref<2x32x128xf32, #tpu.memory_space<vmem>>, vector<1x32x128xf32>
    %32 = vector.shape_cast %31 : vector<1x32x128xf32> to vector<32x128xf32>
    %33 = arith.subf %30, %32 : vector<32x128xf32>
    %34 = arith.mulf %33, %33 : vector<32x128xf32>
    %cst_19 = arith.constant 0.000000e+00 : f32
    %35 = vector.broadcast %cst_19 : f32 to vector<32x128xf32>
    %36 = arith.select %14, %34, %35 : vector<32x128xi1>, vector<32x128xf32>
    %37 = vector.shape_cast %36 : vector<32x128xf32> to vector<4x8x128xf32>
    %cst_20 = arith.constant dense<0.000000e+00> : vector<8x128xf32>
    %38 = vector.multi_reduction <add>, %37, %cst_20 [0] : vector<4x8x128xf32> to vector<8x128xf32>
    %c0_21 = arith.constant 0 : index
    %c1_22 = arith.constant 1 : index
    %c0_23 = arith.constant 0 : index
    %c0_24 = arith.constant 0 : index
    %39 = vector.load %arg5[%c0_21, %c1_22, %c0_23, %c0_24] : memref<1x2x8x128xf32, #tpu.memory_space<vmem>>, vector<1x1x8x128xf32>
    %40 = vector.shape_cast %39 : vector<1x1x8x128xf32> to vector<8x128xf32>
    %41 = arith.addf %40, %38 : vector<8x128xf32>
    %c0_25 = arith.constant 0 : index
    %c1_26 = arith.constant 1 : index
    %c0_27 = arith.constant 0 : index
    %c0_28 = arith.constant 0 : index
    %42 = vector.load %arg5[%c0_25, %c1_26, %c0_27, %c0_28] : memref<1x2x8x128xf32, #tpu.memory_space<vmem>>, vector<1x1x8x128xf32>
    %43 = vector.shape_cast %42 : vector<1x1x8x128xf32> to vector<8x128xf32>
    %44 = vector.shape_cast %41 : vector<8x128xf32> to vector<1x1x8x128xf32>
    tpu.vector_store %arg5[%c0_25, %c1_26, %c0_27, %c0_28], %44 {strides = array<i32>} : memref<1x2x8x128xf32, #tpu.memory_space<vmem>>, vector<1x1x8x128xf32>,
    return
  }
  func.func @transform_0(%arg0: i32, %arg1: i32) -> (i32, i32) {
    %c1_i32 = arith.constant 1 : i32
    %0 = arith.muli %arg0, %c1_i32 : i32
    %1 = arith.addi %0, %arg1 : i32
    %c0_i32 = arith.constant 0 : i32
    %2 = arith.minsi %1, %c0_i32 : i32
    %c0_i32_0 = arith.constant 0 : i32
    %c0_i32_1 = arith.constant 0 : i32
    return %2, %c0_i32_0 : i32, i32
  }
  func.func @transform_1(%arg0: i32, %arg1: i32) -> (i32, i32) {
    %c1_i32 = arith.constant 1 : i32
    %0 = arith.muli %arg0, %c1_i32 : i32
    %1 = arith.addi %0, %arg1 : i32
    %c0_i32 = arith.constant 0 : i32
    %2 = arith.minsi %1, %c0_i32 : i32
    %c0_i32_0 = arith.constant 0 : i32
    %c0_i32_1 = arith.constant 0 : i32
    return %2, %c0_i32_0 : i32, i32
  }
  func.func @transform_2(%arg0: i32, %arg1: i32) -> (i32, i32, i32) {
    %c1_i32 = arith.constant 1 : i32
    %0 = arith.muli %arg0, %c1_i32 : i32
    %1 = arith.addi %0, %arg1 : i32
    %c0_i32 = arith.constant 0 : i32
    %2 = arith.minsi %1, %c0_i32 : i32
    %c0_i32_0 = arith.constant 0 : i32
    %c0_i32_1 = arith.constant 0 : i32
    %c0_i32_2 = arith.constant 0 : i32
    return %c0_i32_0, %2, %c0_i32_1 : i32, i32, i32
  }
  func.func @transform_3(%arg0: i32, %arg1: i32) -> (i32, i32, i32, i32) {
    %c0_i32 = arith.constant 0 : i32
    %c0_i32_0 = arith.constant 0 : i32
    %c0_i32_1 = arith.constant 0 : i32
    %c0_i32_2 = arith.constant 0 : i32
    return %arg0, %c0_i32, %c0_i32_0, %c0_i32_1 : i32, i32, i32, i32
  }
}

</mosaic_0001>

<llo_original>
// kernel: tpu_custom_call.1
$region0: #{tpu_custom_call.1}
  #allocation0 [shape = 'u32[]', space=smem, size = 0x4, offset = 0x4, fixed_abs, tag = 'smem constant byte address 0x4 - core index']
  #allocation1 [shape = 'u32[144,128]{1,0:T(1,128)}', space=vmem, size = 0x12000, scoped, tag = 'internal scratch']
  %s0 = inlined_call_operand.hbm [shape: f32[32,128], index: 0, kind: input, shape index: {}]
  %s1 = inlined_call_operand.hbm [shape: f32[32,128], index: 1, kind: input, shape index: {}]
  %s2 = inlined_call_operand.hbm [shape: f32[2,32,128], index: 2, kind: input, shape index: {}]
  %s3 = inlined_call_operand.hbm [shape: f32[1,2,8,128], index: 3, kind: output, shape index: {}]
  %s4 = sld [smem:[#allocation0]]
  $region38: #{tpu_custom_call.1} parent=0
    _
  %s6 = ssub.s32 1, %s4
  %s7 = scalar_select 0, %s6, %s4
  $region1: #{tpu_custom_call.1} parent=0
    #allocation2 [shape = 'u8[16384]{0}', space=vmem, size = 0x4000, scoped, tag = 'input window, operand 0, single buffered']
    #allocation3 [shape = 's32[1]{0}', space=sflag, size = 0x4, scoped, tag = 'scoped memory for tpu_custom_call.1']
    #allocation4 [shape = 's32[1]{0}', space=sflag, size = 0x4, scoped, tag = 'scoped memory for tpu_custom_call.1']
    #allocation5 [shape = 'u8[16384]{0}', space=vmem, size = 0x4000, scoped, tag = 'input window, operand 1, single buffered']
    #allocation6 [shape = 's32[1]{0}', space=sflag, size = 0x4, scoped, tag = 'scoped memory for tpu_custom_call.1']
    #allocation7 [shape = 'u8[32768]{0}', space=vmem, size = 0x8000, scoped, tag = 'input window, operand 2, single buffered']
    #allocation8 [shape = 'u8[8192]{0}', space=vmem, size = 0x2000, scoped, tag = 'output window, operand 0, single buffered']
    %8 = vsyncpa [#allocation3], 0
    %9 = vsyncpa [#allocation6], 0
    %10 = vsyncpa [#allocation4], 0
    // Predicated region
    $region2: #{tpu_custom_call.1} parent=1 // pred_check
      _
    $region3: #{tpu_custom_call.1} parent=1 // pred_check_branch
      %12 = sbr.rel (0) target = $region5
    $region4: #{tpu_custom_call.1} parent=1 // pred_region
      %s13 = sadd.s32 0, 0
      %p14 = scmp.lt.s32.totalorder %s13, 0
      %s15 = scalar_select %p14, %s13, 0
      %s16 = smul.u32 4, %s15
      %s18 = ssub.s32 512, 512
      %19 = vsyncadd [#allocation3], %s18
      %s20 = smul.addr %s16, 128
      %s21 = scalar_lea.hbm %s0, %s20
      %s22 = sshll.u32 [#allocation2], 4
      %s23 = int_to_ptr.vmem [resolvable:$true] %s22
      %28 = dma.hbm_to_vmem [thread:$0]  %s21, 512, %s23, [#allocation3], 128, 128, 8
    $region5: #{tpu_custom_call.1} parent=1 // pred_fallthru
      _
    // Predicated region
    $region6: #{tpu_custom_call.1} parent=1 // pred_check
      _
    $region7: #{tpu_custom_call.1} parent=1 // pred_check_branch
      %30 = sbr.rel (0) target = $region9
    $region8: #{tpu_custom_call.1} parent=1 // pred_region
      %s31 = sadd.s32 0, 0
      %p32 = scmp.lt.s32.totalorder %s31, 0
      %s33 = scalar_select %p32, %s31, 0
      %s34 = smul.u32 4, %s33
      %s36 = ssub.s32 512, 512
      %37 = vsyncadd [#allocation6], %s36
      %s38 = smul.addr %s34, 128
      %s39 = scalar_lea.hbm %s1, %s38
      %s40 = sshll.u32 [#allocation5], 4
      %s41 = int_to_ptr.vmem [resolvable:$true] %s40
      %46 = dma.hbm_to_vmem [thread:$0]  %s39, 512, %s41, [#allocation6], 128, 128, 8
    $region9: #{tpu_custom_call.1} parent=1 // pred_fallthru
      _
    // Predicated region
    $region10: #{tpu_custom_call.1} parent=1 // pred_check
      _
    $region11: #{tpu_custom_call.1} parent=1 // pred_check_branch
      %48 = sbr.rel (0) target = $region13
    $region12: #{tpu_custom_call.1} parent=1 // pred_region
      %s49 = sadd.s32 0, 0
      %p50 = scmp.lt.s32.totalorder %s49, 0
      %s51 = scalar_select %p50, %s49, 0
      %s52 = smul.u32 4, %s51
      %s54 = ssub.s32 1024, 1024
      %55 = vsyncadd [#allocation6], %s54
      %s56 = smul.addr %s52, 128
      %s57 = scalar_lea.hbm %s2, %s56
      %s58 = sshll.u32 [#allocation7], 4
      %s59 = int_to_ptr.vmem [resolvable:$true] %s58
      %64 = dma.hbm_to_vmem [thread:$0]  %s57, 1024, %s59, [#allocation6], 128, 128, 8
    $region13: #{tpu_custom_call.1} parent=1 // pred_fallthru
      _
    // Predicated region
    $region14: #{tpu_custom_call.1} parent=1 // pred_check
      _
    $region15: #{tpu_custom_call.1} parent=1 // pred_check_branch
      %66 = sbr.rel (0) target = $region17
    $region16: #{tpu_custom_call.1} parent=1 // pred_region
      %67 = dma.done [#allocation3], 512
    $region17: #{tpu_custom_call.1} parent=1 // pred_fallthru
      _
    // Predicated region
    $region18: #{tpu_custom_call.1} parent=1 // pred_check
      _
    $region19: #{tpu_custom_call.1} parent=1 // pred_check_branch
      %69 = sbr.rel (0) target = $region21
    $region20: #{tpu_custom_call.1} parent=1 // pred_region
      %70 = dma.done [#allocation6], 512
    $region21: #{tpu_custom_call.1} parent=1 // pred_fallthru
      _
    // Predicated region
    $region22: #{tpu_custom_call.1} parent=1 // pred_check
      _
    $region23: #{tpu_custom_call.1} parent=1 // pred_check_branch
      %72 = sbr.rel (0) target = $region25
    $region24: #{tpu_custom_call.1} parent=1 // pred_region
      %73 = dma.done [#allocation6], 1024
    $region25: #{tpu_custom_call.1} parent=1 // pred_fallthru
      _
    %s74 = sadd.s32 0, 0
    %p75 = scmp.lt.s32.totalorder %s74, 0
    %s76 = scalar_select %p75, %s74, 0
    %s77 = smul.u32 4, %s76
    %s78 = sadd.s32 0, 0
    %p79 = scmp.lt.s32.totalorder %s78, 0
    %s80 = scalar_select %p79, %s78, 0
    %s81 = smul.u32 4, %s80
    %s82 = sadd.s32 0, 0
    %p83 = scmp.lt.s32.totalorder %s82, 0
    %s84 = scalar_select %p83, %s82, 0
    %s85 = smul.u32 4, %s84
    %p86 = scmp.eq.s32.totalorder 0, 0
    // Predicated region
    $region26: #{tpu_custom_call.1} parent=1 // pred_check
      %p87 = pneg %p86
    $region27: #{tpu_custom_call.1} parent=1 // pred_check_branch
      %89 = sbr.rel (%p87) target = $region29
    $region28: #{tpu_custom_call.1} parent=1 // pred_region
      %90 = vst [vmem:[#allocation8] sm:$0xff] 0.0
      %91 = vst [vmem:[#allocation8 + $0x8] sm:$0xff] 0.0
    $region29: #{tpu_custom_call.1} parent=1 // pred_fallthru
      _
    %s92 = sadd.s32 0, 0
    %s93 = smul.u32 %s92, 4096
    %v94 = vlaneseq
    %v95 = vshrl.u32 %v94, 7
    %v96 = vadd.s32 %v95, 8
    %v97 = vadd.s32 %v95, 16
    %v98 = vadd.s32 %v95, 24
    %v99 = vlaneseq
    %v100 = vand.u32 %v99, 127
    %v101 = vmul.u32 %v95, 128
    %v102 = vmul.u32 %v96, 128
    %v103 = vmul.u32 %v97, 128
    %v104 = vmul.u32 %v98, 128
    %v105 = vstv %s93
    %v106 = vadd.s32 %v105, %v101
    %v107 = vadd.s32 %v105, %v102
    %v108 = vadd.s32 %v105, %v103
    %v109 = vadd.s32 %v105, %v104
    %v110 = vadd.s32 %v106, %v100
    %v111 = vadd.s32 %v107, %v100
    %v112 = vadd.s32 %v108, %v100
    %v113 = vadd.s32 %v109, %v100
    %vm114 = vcmp.lt.s32.totalorder %v110, 4096
    %vm115 = vcmp.lt.s32.totalorder %v111, 4096
    %vm116 = vcmp.lt.s32.totalorder %v112, 4096
    %vm117 = vcmp.lt.s32.totalorder %v113, 4096
    %v118 = vld [vmem:[#allocation2] sm:$0xff]
    %v119 = vld [vmem:[#allocation2 + $0x8] sm:$0xff]
    %v120 = vld [vmem:[#allocation2 + $0x10] sm:$0xff]
    %v121 = vld [vmem:[#allocation2 + $0x18] sm:$0xff]
    %v122 = vld [vmem:[#allocation7] sm:$0xff]
    %v123 = vld [vmem:[#allocation7 + $0x8] sm:$0xff]
    %v124 = vld [vmem:[#allocation7 + $0x10] sm:$0xff]
    %v125 = vld [vmem:[#allocation7 + $0x18] sm:$0xff]
    %v126 = vsub.f32 %v118, %v122
    %v127 = vsub.f32 %v119, %v123
    %v128 = vsub.f32 %v120, %v124
    %v129 = vsub.f32 %v121, %v125
    %v130 = vmul.f32 %v126, %v126
    %v131 = vmul.f32 %v127, %v127
    %v132 = vmul.f32 %v128, %v128
    %v133 = vmul.f32 %v129, %v129
    %v134 = vsel %vm114, %v130, 0.0
    %v135 = vsel %vm115, %v131, 0.0
    %v136 = vsel %vm116, %v132, 0.0
    %v137 = vsel %vm117, %v133, 0.0
    %v138 = vadd.f32 %v134, %v135
    %v139 = vadd.f32 %v138, %v136
    %v140 = vadd.f32 %v139, %v137
    %v141 = vld [vmem:[#allocation8] sm:$0xff]
    %v142 = vadd.f32 %v141, %v140
    %143 = vst [vmem:[#allocation8] sm:$0xff] %v142
    %v144 = vld [vmem:[#allocation5] sm:$0xff]
    %v145 = vld [vmem:[#allocation5 + $0x8] sm:$0xff]
    %v146 = vld [vmem:[#allocation5 + $0x10] sm:$0xff]
    %v147 = vld [vmem:[#allocation5 + $0x18] sm:$0xff]
    %s148 = scalar_lea.vmem [#allocation7], 32
    %v149 = vld [vmem:[%s148] sm:$0xff]
    %v150 = vld [vmem:[%s148 + $0x8] sm:$0xff]
    %v151 = vld [vmem:[%s148 + $0x10] sm:$0xff]
    %v152 = vld [vmem:[%s148 + $0x18] sm:$0xff]
    %v153 = vsub.f32 %v144, %v149
    %v154 = vsub.f32 %v145, %v150
    %v155 = vsub.f32 %v146, %v151
    %v156 = vsub.f32 %v147, %v152
    %v157 = vmul.f32 %v153, %v153
    %v158 = vmul.f32 %v154, %v154
    %v159 = vmul.f32 %v155, %v155
    %v160 = vmul.f32 %v156, %v156
    %v161 = vsel %vm114, %v157, 0.0
    %v162 = vsel %vm115, %v158, 0.0
    %v163 = vsel %vm116, %v159, 0.0
    %v164 = vsel %vm117, %v160, 0.0
    %v165 = vadd.f32 %v161, %v162
    %v166 = vadd.f32 %v165, %v163
    %v167 = vadd.f32 %v166, %v164
    %s168 = scalar_lea.vmem [#allocation8], 8
    %v169 = vld [vmem:[%s168] sm:$0xff]
    %v170 = vadd.f32 %v169, %v167
    %171 = vst [vmem:[%s168] sm:$0xff] %v170
    // Predicated region
    $region30: #{tpu_custom_call.1} parent=1 // pred_check
      _
    $region31: #{tpu_custom_call.1} parent=1 // pred_check_branch
      %173 = sbr.rel (0) target = $region33
    $region32: #{tpu_custom_call.1} parent=1 // pred_region
      %s175 = ssub.s32 256, 256
      %176 = vsyncadd [#allocation4], %s175
      %s177 = sshll.u32 [#allocation8], 4
      %s178 = int_to_ptr.vmem [resolvable:$true] %s177
      %183 = dma.vmem_to_hbm [thread:$0]  %s178, 256, %s3, [#allocation4], 128, 128, 8
    $region33: #{tpu_custom_call.1} parent=1 // pred_fallthru
      _
    // Predicated region
    $region34: #{tpu_custom_call.1} parent=1 // pred_check
      _
    $region35: #{tpu_custom_call.1} parent=1 // pred_check_branch
      %185 = sbr.rel (0) target = $region37
    $region36: #{tpu_custom_call.1} parent=1 // pred_region
      %186 = dma.done [#allocation4], 256
    $region37: #{tpu_custom_call.1} parent=1 // pred_fallthru
      _
    %187 = vsyncpa [#allocation3], 1
    %188 = vsyncpa [#allocation6], 1
    %189 = vsyncpa [#allocation4], 1

</llo_original>
